<compile_context>
chip_gen: v7x
topology: tpu7x:2x2x1
jax: 0.10.0
libtpu: 0.0.40
codegen_flags: <defaults>
</compile_context>

<pallas_src>
import functools

import jax
import jax.numpy as jnp
from jax.experimental import pallas as pl
from jax.experimental.pallas import tpu as pltpu


def _focal_rows(logits_ref, labels_ref, *, alpha, gamma):
    """Shared math: per-row focal loss, shape (TB, 1) f32."""
    x = logits_ref[...].astype(jnp.float32)
    y = labels_ref[...].astype(jnp.float32)

    # Numerically-stable log-softmax, with log_p fused away:
    #   ce = -(y * (shifted - log(sum_exp))).sum(-1)
    #      = log(sum_exp) * sum(y, -1) - sum(y * shifted, -1)
    m = jnp.max(x, axis=-1, keepdims=True)                        # (TB, 1)
    shifted = x - m                                               # (TB, C)
    sum_exp = jnp.sum(jnp.exp(shifted), axis=-1, keepdims=True)   # (TB, 1)
    y_sum = jnp.sum(y, axis=-1, keepdims=True)                    # (TB, 1)
    ys_dot = jnp.sum(y * shifted, axis=-1, keepdims=True)         # (TB, 1)
    ce = jnp.log(sum_exp) * y_sum - ys_dot                        # (TB, 1)

    pt = jnp.exp(-ce)
    one_minus_pt = 1.0 - pt
    if gamma == 2.0:                  # default: avoid a pow lowering
        focal = one_minus_pt * one_minus_pt
    elif gamma == 1.0:
        focal = one_minus_pt
    elif gamma == 0.0:
        focal = jnp.ones_like(one_minus_pt)
    else:
        focal = jnp.power(jnp.maximum(one_minus_pt, 0.0), gamma)
    return (alpha * focal) * ce                                   # (TB, 1)


def _focal_loss_tile_sum_kernel(logits_ref, labels_ref, out_ref, *, alpha, gamma):
    """mean/sum path: write one per-tile partial sum, broadcast into (1,8,128)."""
    loss = _focal_rows(logits_ref, labels_ref, alpha=alpha, gamma=gamma)
    tile_sum = jnp.sum(loss)                                      # scalar
    # Padded zero rows contribute exactly 0 (ce = 0 -> loss = 0).
    out_ref[...] = jnp.broadcast_to(tile_sum, out_ref.shape)


def _focal_loss_rows_kernel(logits_ref, labels_ref, out_ref, *, alpha, gamma):
    """reduction='none' path: per-row loss broadcast across 128 lanes."""
    loss = _focal_rows(logits_ref, labels_ref, alpha=alpha, gamma=gamma)
    # TODO(synk): relayout the (TB,1) column to a lane-major (TB//128,128) slab
    # to cut the 'none'-path writeback 128x (needs TB % 1024 handling).
    out_ref[...] = jnp.broadcast_to(loss, out_ref.shape)


def _vmem_budget_bytes():
    """Generation-aware VMEM budget for the pipelined working set."""
    phys = 64 << 20                                 # assume the smallest (v7x)
    try:
        info = pltpu.get_tpu_info()
        phys = int(getattr(info, "vmem_capacity_bytes", phys))
    except Exception:
        pass
    budget = min(24 << 20, phys // 3)               # ~24 MiB v5e/v6e, ~21 MiB v7x
    limit = min(budget + (8 << 20), (phys * 3) // 4)
    return budget, limit


def focal_loss(logits, labels, alpha=0.25, gamma=2.0, epsilon=1e-9,
               reduction="mean", max_block_rows=8192):
    """JAX wrapper matching FocalLoss.forward (epsilon unused, as in the spec)."""
    assert logits.shape == labels.shape and logits.ndim == 2
    n, c = logits.shape
    itemsize = jnp.dtype(logits.dtype).itemsize
    sub = 16 if itemsize < 4 else 8   # bf16/fp16 want 16-row sublane multiples

    vmem_budget, vmem_limit = _vmem_budget_bytes()

    # Per-row VMEM footprint: 2 inputs x 2 pipeline buffers + ~4 f32 temps
    # (x, y, shifted, exp(shifted); log_p fused away) + output row ('none' only).
    out_row_bytes = 2 * 128 * 4 if reduction == "none" else 0
    bytes_per_row = 4 * c * itemsize + 4 * c * 4 + out_row_bytes
    cap = max(sub, (vmem_budget // bytes_per_row) // sub * sub)
    # TODO(synk): for very large C where even `sub` rows blow the budget, add a
    # class-dim grid axis with an online logsumexp instead of clamping to `sub`.
    tb = min(max_block_rows, cap, pl.cdiv(n, sub) * sub)
    tb = max(sub, (tb // sub) * sub)

    # v7x has 2 TensorCores: make sure the parallel grid has >= 2 steps.
    if pl.cdiv(n, tb) < 2 and n > sub:
        tb = max(sub, pl.cdiv(pl.cdiv(n, 2), sub) * sub)

    n_pad = pl.cdiv(n, tb) * tb
    if n_pad != n:
        pad = ((0, n_pad - n), (0, 0))
        logits = jnp.pad(logits, pad)   # zero rows -> loss 0
        labels = jnp.pad(labels, pad)
    num_tiles = n_pad // tb

    out_bytes = n_pad * 128 * 4 if reduction == "none" else num_tiles * 8 * 128 * 4
    cost = pl.CostEstimate(
        flops=8 * n * c,
        transcendentals=n * (c + 2),
        bytes_accessed=2 * n * c * itemsize + out_bytes,
    )
    cparams = pltpu.CompilerParams(
        dimension_semantics=("parallel",),
        vmem_limit_bytes=int(vmem_limit),
    )
    in_specs = [
        pl.BlockSpec((tb, c), lambda i: (i, 0)),   # logits
        pl.BlockSpec((tb, c), lambda i: (i, 0)),   # labels
    ]

    if reduction in ("mean", "sum"):
        kernel = functools.partial(
            _focal_loss_tile_sum_kernel, alpha=float(alpha), gamma=float(gamma))
        partials = pl.pallas_call(
            kernel,
            out_shape=jax.ShapeDtypeStruct((num_tiles, 8, 128), jnp.float32),
            grid=(num_tiles,),
            in_specs=in_specs,
            out_specs=pl.BlockSpec((1, 8, 128), lambda i: (i, 0, 0)),
            compiler_params=cparams,
            cost_estimate=cost,
        )(logits, labels)
        total = jnp.sum(partials[:, 0, 0])         # tiny (num_tiles,) reduction
        if reduction == "mean":
            return total / jnp.float32(n)
        return total

    # reduction == 'none'
    kernel = functools.partial(
        _focal_loss_rows_kernel, alpha=float(alpha), gamma=float(gamma))
    per_row = pl.pallas_call(
        kernel,
        out_shape=jax.ShapeDtypeStruct((n_pad, 128), jnp.float32),
        grid=(num_tiles,),
        in_specs=in_specs,
        out_specs=pl.BlockSpec((tb, 128), lambda i: (i, 0)),
        compiler_params=cparams,
        cost_estimate=cost,
    )(logits, labels)
    return per_row[:n, 0]


if __name__ == "__main__":
    key = jax.random.PRNGKey(0)
    k1, k2 = jax.random.split(key)

    N, C = 16, 32  # (batch, num_answer) — small synthetic shapes
    logits = jax.random.normal(k1, (N, C), dtype=jnp.float32)
    # soft multi-label targets in [0, 1] (VQA-style answer scores)
    labels = jax.nn.softmax(jax.random.normal(k2, (N, C), dtype=jnp.float32), axis=-1)

    # pure-JAX reference: exact transcription of the PyTorch forward
    def ref_rows(logits, labels, alpha=0.25, gamma=2.0):
        p = jax.nn.softmax(logits, axis=-1)
        ce = -jnp.sum(labels * jnp.log(p), axis=-1)
        pt = jnp.exp(-ce)
        return alpha * (1.0 - pt) ** gamma * ce

    loss_mean = focal_loss(logits, labels, reduction="mean")
    jax.block_until_ready(loss_mean)
    exp_mean = jnp.mean(ref_rows(logits, labels))
    assert jnp.allclose(loss_mean, exp_mean, atol=1e-5, rtol=1e-5), (loss_mean, exp_mean)

    loss_sum = focal_loss(logits, labels, reduction="sum")
    jax.block_until_ready(loss_sum)
    exp_sum = jnp.sum(ref_rows(logits, labels))
    assert jnp.allclose(loss_sum, exp_sum, atol=1e-5, rtol=1e-5), (loss_sum, exp_sum)

    loss_none = focal_loss(logits, labels, reduction="none")
    jax.block_until_ready(loss_none)
    exp_none = ref_rows(logits, labels)
    assert jnp.allclose(loss_none, exp_none, atol=1e-5, rtol=1e-5)

    print("KERNEL_OK")
</pallas_src>

<mosaic_0001>
module attributes {stable_mosaic.version = 11 : i64} {
  func.func @_focal_loss_tile_sum_kernel(%arg0: i32, %arg1: memref<8x32xf32, #tpu.memory_space<vmem>>, %arg2: memref<8x32xf32, #tpu.memory_space<vmem>>, %arg3: memref<1x8x128xf32, #tpu.memory_space<vmem>>) attributes {dimension_semantics = [#tpu.dimension_semantics<parallel>], iteration_bounds = array<i64: 2>, scalar_prefetch = 0 : i64, scratch_operands = 0 : i64, tpu.core_type = #tpu.core_type<tc>, window_params = [{transform_indices = @transform_0, window_bounds = array<i64: 8, 32>}, {transform_indices = @transform_1, window_bounds = array<i64: 8, 32>}, {transform_indices = @transform_2, window_bounds = array<i64: 1, 8, 128>}]} {
    %c0 = arith.constant 0 : index
    %c0_0 = arith.constant 0 : index
    %0 = vector.load %arg1[%c0, %c0_0] : memref<8x32xf32, #tpu.memory_space<vmem>>, vector<8x32xf32>
    %c0_1 = arith.constant 0 : index
    %c0_2 = arith.constant 0 : index
    %1 = vector.load %arg2[%c0_1, %c0_2] : memref<8x32xf32, #tpu.memory_space<vmem>>, vector<8x32xf32>
    %cst = arith.constant dense<0xFF800000> : vector<8xf32>
    %2 = vector.multi_reduction <maximumf>, %0, %cst [1] : vector<8x32xf32> to vector<8xf32>
    %3 = vector.shape_cast %2 : vector<8xf32> to vector<8x1xf32>
    %4 = vector.broadcast %3 : vector<8x1xf32> to vector<8x32xf32>
    %5 = arith.subf %0, %4 : vector<8x32xf32>
    %6 = math.exp %5 : vector<8x32xf32>
    %cst_3 = arith.constant dense<0.000000e+00> : vector<8xf32>
    %7 = vector.multi_reduction <add>, %6, %cst_3 [1] : vector<8x32xf32> to vector<8xf32>
    %8 = vector.shape_cast %7 : vector<8xf32> to vector<8x1xf32>
    %cst_4 = arith.constant dense<0.000000e+00> : vector<8xf32>
    %9 = vector.multi_reduction <add>, %1, %cst_4 [1] : vector<8x32xf32> to vector<8xf32>
    %10 = vector.shape_cast %9 : vector<8xf32> to vector<8x1xf32>
    %11 = arith.mulf %1, %5 : vector<8x32xf32>
    %cst_5 = arith.constant dense<0.000000e+00> : vector<8xf32>
    %12 = vector.multi_reduction <add>, %11, %cst_5 [1] : vector<8x32xf32> to vector<8xf32>
    %13 = vector.shape_cast %12 : vector<8xf32> to vector<8x1xf32>
    %14 = math.log %8 : vector<8x1xf32>
    %15 = arith.mulf %14, %10 : vector<8x1xf32>
    %16 = arith.subf %15, %13 : vector<8x1xf32>
    %cst_6 = arith.constant 0.000000e+00 : f32
    %17 = vector.broadcast %cst_6 : f32 to vector<8x1xf32>
    %18 = arith.subf %17, %16 : vector<8x1xf32>
    %19 = math.exp %18 : vector<8x1xf32>
    %cst_7 = arith.constant 1.000000e+00 : f32
    %20 = vector.broadcast %cst_7 : f32 to vector<8x1xf32>
    %21 = arith.subf %20, %19 : vector<8x1xf32>
    %22 = arith.mulf %21, %21 : vector<8x1xf32>
    %cst_8 = arith.constant 2.500000e-01 : f32
    %23 = vector.broadcast %cst_8 : f32 to vector<8x1xf32>
    %24 = arith.mulf %23, %22 : vector<8x1xf32>
    %25 = arith.mulf %24, %16 : vector<8x1xf32>
    %26 = vector.shape_cast %25 : vector<8x1xf32> to vector<1x8x1xf32>
    %cst_9 = arith.constant dense<0.000000e+00> : vector<1xf32>
    %27 = vector.multi_reduction <add>, %26, %cst_9 [1, 2] : vector<1x8x1xf32> to vector<1xf32>
    %28 = vector.shape_cast %27 : vector<1xf32> to vector<1x1x1xf32>
    %29 = vector.extract %28[0, 0, 0] : f32 from vector<1x1x1xf32>
    %30 = vector.broadcast %29 : f32 to vector<1x8x128xf32>
    %c0_10 = arith.constant 0 : index
    %c0_11 = arith.constant 0 : index
    %c0_12 = arith.constant 0 : index
    %31 = vector.load %arg3[%c0_10, %c0_11, %c0_12] : memref<1x8x128xf32, #tpu.memory_space<vmem>>, vector<1x8x128xf32>
    tpu.vector_store %arg3[%c0_10, %c0_11, %c0_12], %30 {strides = array<i32>} : memref<1x8x128xf32, #tpu.memory_space<vmem>>, vector<1x8x128xf32>,
    return
  }
  func.func @transform_0(%arg0: i32) -> (i32, i32) {
    %c0_i32 = arith.constant 0 : i32
    %c0_i32_0 = arith.constant 0 : i32
    return %arg0, %c0_i32 : i32, i32
  }
  func.func @transform_1(%arg0: i32) -> (i32, i32) {
    %c0_i32 = arith.constant 0 : i32
    %c0_i32_0 = arith.constant 0 : i32
    return %arg0, %c0_i32 : i32, i32
  }
  func.func @transform_2(%arg0: i32) -> (i32, i32, i32) {
    %c0_i32 = arith.constant 0 : i32
    %c0_i32_0 = arith.constant 0 : i32
    %c0_i32_1 = arith.constant 0 : i32
    return %arg0, %c0_i32, %c0_i32_0 : i32, i32, i32
  }
}

</mosaic_0001>

<llo_original>
// kernel: tpu_custom_call.1
$region0: #{tpu_custom_call.1}
  #allocation0 [shape = 'u32[]', space=smem, size = 0x4, offset = 0x4, fixed_abs, tag = 'smem constant byte address 0x4 - core index']
  #allocation1 [shape = 'u32[144,128]{1,0:T(1,128)}', space=vmem, size = 0x12000, scoped, tag = 'internal scratch']
  %s0 = inlined_call_operand.hbm [shape: f32[16,32], index: 0, kind: input, shape index: {}]
  %s1 = inlined_call_operand.hbm [shape: f32[16,32], index: 1, kind: input, shape index: {}]
  %s2 = inlined_call_operand.hbm [shape: f32[2,8,128], index: 2, kind: output, shape index: {}]
  %s3 = sld [smem:[#allocation0]]
  $region49: #{tpu_custom_call.1} parent=0
    _
  %s5 = ssub.s32 1, %s3
  %s6 = scalar_select 0, %s5, %s3
  $region1: #{tpu_custom_call.1} parent=0
    #allocation2 [shape = 'u8[8192]{0}', space=vmem, size = 0x2000, scoped, tag = 'input window, operand 0']
    #allocation3 [shape = 's32[2]{0}', space=sflag, size = 0x8, scoped, tag = 'scoped memory for tpu_custom_call.1']
    #allocation4 [shape = 's32[2]{0}', space=sflag, size = 0x8, scoped, tag = 'scoped memory for tpu_custom_call.1']
    #allocation5 [shape = 'u8[8192]{0}', space=vmem, size = 0x2000, scoped, tag = 'input window, operand 1']
    #allocation6 [shape = 's32[2]{0}', space=sflag, size = 0x8, scoped, tag = 'scoped memory for tpu_custom_call.1']
    #allocation7 [shape = 'u8[8192]{0}', space=vmem, size = 0x2000, scoped, tag = 'output window, operand 0']
    %7 = vsyncpa [#allocation3], 0
    %s8 = scalar_lea.sflag [#allocation3], 1
    %9 = vsyncpa %s8, 0
    %10 = vsyncpa [#allocation6], 0
    %s11 = scalar_lea.sflag [#allocation6], 1
    %12 = vsyncpa %s11, 0
    %13 = vsyncpa [#allocation4], 0
    %s14 = scalar_lea.sflag [#allocation4], 1
    %15 = vsyncpa %s14, 0
    loop: start=0, step=1, limit=4
    $region2: #{tpu_custom_call.1} parent=1 // loop_pre_header
      _
    $region3: #{tpu_custom_call.1} parent=1 // loop_header
      %s17 = sphi 0, %s21
      %p18 = scmp.ge.s32.totalorder %s17, 4
      %s27 = sphi 0, %s29
      %s30 = sphi 0, %s27
      %s31 = sphi 0, %s30
      %s47 = sphi 0, %s31
      %s53 = sphi 0, %s55
      %s56 = sphi 0, %s53
      %s57 = sphi 0, %s56
      %s73 = sphi 0, %s57
      %s79 = sphi 0, %s81
      %s82 = sphi 0, %s79
      %s83 = sphi 0, %s82
      %s99 = sphi 0, %s83
    $region4: #{tpu_custom_call.1} parent=1 // loop_header_branch
      %20 = sbr.rel (%p18) target = $region8
    $region5: #{tpu_custom_call.1} parent=1 // loop_body
      %s22 = ssub.s32 %s17, 1
      %s23 = ssub.s32 %s17, 2
      %s24 = sadd.s32 %s17, 1
      %s25 = ssub.s32 %s17, %s24
      %p26 = scmp.eq.s32.totalorder %s25, 0
      %s28 = sadd.s32 %s27, 1
      %s29 = scalar_select %p26, %s27, %s28
      %p32 = pneg %p26
      %p33 = scmp.eq.s32.totalorder %s17, 1
      %p34 = por %p32, %p33
      %p35 = scmp.ne.s32.totalorder %s27, %s30
      %p36 = scmp.eq.s32.totalorder %s17, 0
      %p37 = por %p35, %p36
      %p38 = scmp.ne.s32.totalorder %s27, %s30
      %p39 = scmp.eq.s32.totalorder %s22, 1
      %p40 = por %p38, %p39
      %p41 = scmp.ne.s32.totalorder %s30, %s31
      %p42 = scmp.eq.s32.totalorder %s22, 0
      %p43 = por %p41, %p42
      %p44 = scmp.ne.s32.totalorder %s30, %s31
      %p45 = scmp.eq.s32.totalorder %s23, 1
      %p46 = por %p44, %p45
      %p48 = scmp.ne.s32.totalorder %s31, %s47
      %p49 = scmp.eq.s32.totalorder %s23, 0
      %p50 = por %p48, %p49
      %s51 = ssub.s32 %s17, %s24
      %p52 = scmp.eq.s32.totalorder %s51, 0
      %s54 = sadd.s32 %s53, 1
      %s55 = scalar_select %p52, %s53, %s54
      %p58 = pneg %p52
      %p59 = scmp.eq.s32.totalorder %s17, 1
      %p60 = por %p58, %p59
      %p61 = scmp.ne.s32.totalorder %s53, %s56
      %p62 = scmp.eq.s32.totalorder %s17, 0
      %p63 = por %p61, %p62
      %p64 = scmp.ne.s32.totalorder %s53, %s56
      %p65 = scmp.eq.s32.totalorder %s22, 1
      %p66 = por %p64, %p65
      %p67 = scmp.ne.s32.totalorder %s56, %s57
      %p68 = scmp.eq.s32.totalorder %s22, 0
      %p69 = por %p67, %p68
      %p70 = scmp.ne.s32.totalorder %s56, %s57
      %p71 = scmp.eq.s32.totalorder %s23, 1
      %p72 = por %p70, %p71
      %p74 = scmp.ne.s32.totalorder %s57, %s73
      %p75 = scmp.eq.s32.totalorder %s23, 0
      %p76 = por %p74, %p75
      %s77 = ssub.s32 %s17, %s24
      %p78 = scmp.eq.s32.totalorder %s77, 0
      %s80 = sadd.s32 %s79, 1
      %s81 = scalar_select %p78, %s79, %s80
      %p84 = pneg %p78
      %p85 = scmp.eq.s32.totalorder %s17, 1
      %p86 = por %p84, %p85
      %p87 = scmp.ne.s32.totalorder %s79, %s82
      %p88 = scmp.eq.s32.totalorder %s17, 0
      %p89 = por %p87, %p88
      %p90 = scmp.ne.s32.totalorder %s79, %s82
      %p91 = scmp.eq.s32.totalorder %s22, 1
      %p92 = por %p90, %p91
      %p93 = scmp.ne.s32.totalorder %s82, %s83
      %p94 = scmp.eq.s32.totalorder %s22, 0
      %p95 = por %p93, %p94
      %p96 = scmp.ne.s32.totalorder %s82, %s83
      %p97 = scmp.eq.s32.totalorder %s23, 1
      %p98 = por %p96, %p97
      %p100 = scmp.ne.s32.totalorder %s83, %s99
      %p101 = scmp.eq.s32.totalorder %s23, 0
      %p102 = por %p100, %p101
      %p103 = scmp.le.s32.totalorder 1, %s17
      %p104 = scmp.lt.s32.totalorder %s17, 3
      %p105 = pnand %p103, %p104
      %p106 = pneg %p105
      // Predicated region
      $region9: #{tpu_custom_call.1} parent=5 // pred_check
        _
      $region10: #{tpu_custom_call.1} parent=5 // pred_check_branch
        %108 = sbr.rel (%p105) target = $region12
      $region11: #{tpu_custom_call.1} parent=5 // pred_region
        %s109 = ssub.s32 %s17, 1
      $region12: #{tpu_custom_call.1} parent=5 // pred_fallthru
        _
      %p110 = scmp.lt.s32.totalorder %s17, 2
      // Predicated region
      $region13: #{tpu_custom_call.1} parent=5 // pred_check
        %p111 = pneg %p110
      $region14: #{tpu_custom_call.1} parent=5 // pred_check_branch
        %113 = sbr.rel (%p111) target = $region16
      $region15: #{tpu_custom_call.1} parent=5 // pred_region
        // Predicated region
        $region17: #{tpu_custom_call.1} parent=15 // pred_check
          %p114 = pneg %p37
        $region18: #{tpu_custom_call.1} parent=15 // pred_check_branch
          %116 = sbr.rel (%p114) target = $region20
        $region19: #{tpu_custom_call.1} parent=15 // pred_region
          %s117 = sand.u32 %s27, 1
          %s118 = scalar_lea.sflag [#allocation3], %s117
          %s119 = sand.u32 %s27, 1
          %s120 = smul.addr %s119, 8
          %s121 = scalar_lea.vmem [#allocation2], %s120
          %s123 = ssub.s32 128, 128
          %124 = vsyncadd %s118, %s123
          %s125 = smul.addr %s17, 128
          %s126 = scalar_lea.hbm %s0, %s125
          %s128 = sshll.u32 %s121, 4
          %s129 = int_to_ptr.vmem [resolvable:$true] %s128
          %131 = dma.hbm_to_vmem [thread:$0]  %s126, 128, %s129, %s118
        $region20: #{tpu_custom_call.1} parent=15 // pred_fallthru
          _
        // Predicated region
        $region21: #{tpu_custom_call.1} parent=15 // pred_check
          %p132 = pneg %p63
        $region22: #{tpu_custom_call.1} parent=15 // pred_check_branch
          %134 = sbr.rel (%p132) target = $region24
        $region23: #{tpu_custom_call.1} parent=15 // pred_region
          %s135 = sand.u32 %s53, 1
          %s136 = scalar_lea.sflag [#allocation6], %s135
          %s137 = sand.u32 %s53, 1
          %s138 = smul.addr %s137, 8
          %s139 = scalar_lea.vmem [#allocation5], %s138
          %s141 = ssub.s32 128, 128
          %142 = vsyncadd %s136, %s141
          %s143 = smul.addr %s17, 128
          %s144 = scalar_lea.hbm %s1, %s143
          %s146 = sshll.u32 %s139, 4
          %s147 = int_to_ptr.vmem [resolvable:$true] %s146
          %149 = dma.hbm_to_vmem [thread:$0]  %s144, 128, %s147, %s136
        $region24: #{tpu_custom_call.1} parent=15 // pred_fallthru
          _
      $region16: #{tpu_custom_call.1} parent=5 // pred_fallthru
        _
      %p150 = scmp.le.s32.totalorder 1, %s17
      %p151 = scmp.lt.s32.totalorder %s17, 3
      %p152 = pnand %p150, %p151
      %p153 = pneg %p152
      // Predicated region
      $region25: #{tpu_custom_call.1} parent=5 // pred_check
        _
      $region26: #{tpu_custom_call.1} parent=5 // pred_check_branch
        %155 = sbr.rel (%p152) target = $region28
      $region27: #{tpu_custom_call.1} parent=5 // pred_region
        %s156 = ssub.s32 %s17, 1
        %s157 = sand.u32 %s30, 1
        %s158 = scalar_lea.sflag [#allocation3], %s157
        %s159 = sand.u32 %s30, 1
        %s160 = smul.addr %s159, 8
        %s161 = scalar_lea.vmem [#allocation2], %s160
        // Predicated region
        $region29: #{tpu_custom_call.1} parent=27 // pred_check
          %p162 = pneg %p43
        $region30: #{tpu_custom_call.1} parent=27 // pred_check_branch
          %164 = sbr.rel (%p162) target = $region32
        $region31: #{tpu_custom_call.1} parent=27 // pred_region
          %165 = dma.done %s158, 128
        $region32: #{tpu_custom_call.1} parent=27 // pred_fallthru
          _
        %s166 = sand.u32 %s56, 1
        %s167 = scalar_lea.sflag [#allocation6], %s166
        %s168 = sand.u32 %s56, 1
        %s169 = smul.addr %s168, 8
        %s170 = scalar_lea.vmem [#allocation5], %s169
        // Predicated region
        $region33: #{tpu_custom_call.1} parent=27 // pred_check
          %p171 = pneg %p69
        $region34: #{tpu_custom_call.1} parent=27 // pred_check_branch
          %173 = sbr.rel (%p171) target = $region36
        $region35: #{tpu_custom_call.1} parent=27 // pred_region
          %174 = dma.done %s167, 128
        $region36: #{tpu_custom_call.1} parent=27 // pred_fallthru
          _
        %s175 = sand.u32 %s30, 1
        %s176 = scalar_lea.sflag [#allocation3], %s175
        %s177 = sand.u32 %s30, 1
        %s178 = smul.addr %s177, 8
        %s179 = scalar_lea.vmem [#allocation2], %s178
        %p180 = pneg %p43
        %p181 = pneg %p40
        %s182 = sand.u32 %s56, 1
        %s183 = scalar_lea.sflag [#allocation6], %s182
        %s184 = sand.u32 %s56, 1
        %s185 = smul.addr %s184, 8
        %s186 = scalar_lea.vmem [#allocation5], %s185
        %p187 = pneg %p69
        %p188 = pneg %p66
        %p189 = pneg %p95
        %p190 = pneg %p92
        %s191 = sand.u32 %s82, 1
        %s192 = scalar_lea.sflag [#allocation4], %s191
        %s193 = sand.u32 %s82, 1
        %s194 = smul.addr %s193, 8
        %s195 = scalar_lea.vmem [#allocation7], %s194
        %v196 = vld [vmem:[%s161] sm:$0xff]
        %v197 = vld [vmem:[%s170] sm:$0xff]
        %vm198 = vcmask 261120
        %v199 = vsel %vm198, %v196, -inf
        %200 = vmax.xlane.f32.xlu0 %v199
        %v201 = vpop.xlane.xlu0 %200
        %v202 = vsub.f32 %v196, %v201
        %v203 = vmul.f32 %v202, 1.442695
        %v204 = vpow.pop %v203
        %v205 = vsel %vm198, %v204, 0.0
        %206 = vadd.xlane.f32.xlu0 %v205
        %v207 = vpop.xlane.xlu0 %206
        %v208 = vsel %vm198, %v197, 0.0
        %209 = vadd.xlane.f32.xlu0 %v208
        %v210 = vpop.xlane.xlu0 %209
        %v211 = vmul.f32 %v197, %v202
        %v212 = vsel %vm198, %v211, 0.0
        %213 = vadd.xlane.f32.xlu0 %v212
        %v214 = vpop.xlane.xlu0 %213
        %v215 = vlog2.pop %v207
        %v216 = vmul.f32 %v215, 0.6931472
        %v217 = vmul.f32 %v216, %v210
        %v218 = vsub.f32 %v217, %v214
        %v219 = vsub.f32 0.0, %v218
        %v220 = vmul.f32 %v219, 1.442695
        %v221 = vpow.pop %v220
        %v222 = vsub.f32 1.0, %v221
        %v223 = vmul.f32 %v222, %v222
        %v224 = vmul.f32 %v223, 0.25
        %v225 = vmul.f32 %v224, %v218
        %vm226 = vcmask 7168
        %v227 = vsel %vm226, %v225, 0.0
        %228 = vadd.xlane.f32.xlu0 %v227
        %v229 = vpop.xlane.xlu0 %228
        %v230 = vrot.slane %v229, 4
        %v231 = vadd.f32 %v229, %v230
        %v232 = vrot.slane %v231, 2
        %v233 = vadd.f32 %v231, %v232
        %v234 = vrot.slane %v233, 1
        %v235 = vadd.f32 %v233, %v234
        %s236 = vtos %v235
        %v237 = vstv %s236
        %238 = vst [vmem:[%s195] sm:$0xff] %v237
        %s239 = sand.u32 %s82, 1
        %s240 = scalar_lea.sflag [#allocation4], %s239
        %s241 = sand.u32 %s82, 1
        %s242 = smul.addr %s241, 8
        %s243 = scalar_lea.vmem [#allocation7], %s242
        // Predicated region
        $region37: #{tpu_custom_call.1} parent=27 // pred_check
          %p244 = pneg %p92
        $region38: #{tpu_custom_call.1} parent=27 // pred_check_branch
          %246 = sbr.rel (%p244) target = $region40
        $region39: #{tpu_custom_call.1} parent=27 // pred_region
          %s248 = ssub.s32 128, 128
          %249 = vsyncadd %s240, %s248
          %s250 = smul.addr %s22, 128
          %s251 = scalar_lea.hbm %s2, %s250
          %s253 = sshll.u32 %s243, 4
          %s254 = int_to_ptr.vmem [resolvable:$true] %s253
          %256 = dma.vmem_to_hbm [thread:$0]  %s254, 128, %s251, %s240
        $region40: #{tpu_custom_call.1} parent=27 // pred_fallthru
          _
      $region28: #{tpu_custom_call.1} parent=5 // pred_fallthru
        _
      %p257 = scmp.le.s32.totalorder 2, %s17
      // Predicated region
      $region41: #{tpu_custom_call.1} parent=5 // pred_check
        %p258 = pneg %p257
      $region42: #{tpu_custom_call.1} parent=5 // pred_check_branch
        %260 = sbr.rel (%p258) target = $region44
      $region43: #{tpu_custom_call.1} parent=5 // pred_region
        %s261 = ssub.s32 %s17, 2
        // Predicated region
        $region45: #{tpu_custom_call.1} parent=43 // pred_check
          %p262 = pneg %p98
        $region46: #{tpu_custom_call.1} parent=43 // pred_check_branch
          %264 = sbr.rel (%p262) target = $region48
        $region47: #{tpu_custom_call.1} parent=43 // pred_region
          %s265 = sand.u32 %s83, 1
          %s266 = scalar_lea.sflag [#allocation4], %s265
          %s267 = sand.u32 %s83, 1
          %s268 = smul.addr %s267, 8
          %s269 = scalar_lea.vmem [#allocation7], %s268
          %270 = dma.done %s266, 128
        $region48: #{tpu_custom_call.1} parent=43 // pred_fallthru
          _
      $region44: #{tpu_custom_call.1} parent=5 // pred_fallthru
        _
    $region6: #{tpu_custom_call.1} parent=1 // loop_footer
      %s21 = sadd.s32 1, %s17
    $region7: #{tpu_custom_call.1} parent=1 // loop_footer_branch
      %16 = sbr.rel target = $region3
    $region8: #{tpu_custom_call.1} parent=1 // loop_exit
      _
    %271 = vsyncpa [#allocation3], 1
    %s272 = scalar_lea.sflag [#allocation3], 1
    %273 = vsyncpa %s272, 1
    %274 = vsyncpa [#allocation6], 1
    %s275 = scalar_lea.sflag [#allocation6], 1
    %276 = vsyncpa %s275, 1
    %277 = vsyncpa [#allocation4], 1
    %s278 = scalar_lea.sflag [#allocation4], 1
    %279 = vsyncpa %s278, 1

</llo_original>
